<compile_context>
chip_gen: v7x
topology: tpu7x:2x2x1
jax: 0.10.0
libtpu: 0.0.40
codegen_flags: <defaults>
</compile_context>

<pallas_src>
import math

import jax
import jax.numpy as jnp
import numpy as np
from jax.experimental import pallas as pl
from jax.experimental.pallas import tpu as pltpu

LANE = 128


# --------------------------------------------------------------------------------------
# Kernel body
# --------------------------------------------------------------------------------------
def _make_iabn1d_kernel(k: float, eps: float, l_actual: int, masked: bool):
    """Build the kernel body with scalar constants baked in.

    `l_actual` is the true sequence length; the block's last dim may be padded to a
    multiple of 128 lanes (padded lanes are zero; `masked=True` masks them out of the
    variance).
    """
    if l_actual < 2:
        raise ValueError("InstanceAwareBatchNorm1d requires L >= 2 (unbiased variance).")

    inv_l = 1.0 / float(l_actual)
    inv_lm1 = 1.0 / float(l_actual - 1)
    s_sigma2_scale = math.sqrt(2.0 / (l_actual - 1))

    def softshrink(v, lbd):
        return jnp.maximum(v - lbd, 0.0) - jnp.maximum(-(v + lbd), 0.0)

    def kernel(x_ref, p_ref, o_ref):
        # x block: (BT, TC, Lp) in the input dtype; compute in f32.
        x = x_ref[...].astype(jnp.float32)

        params = p_ref[...]            # (TC, 4) f32: [running_mean, running_var, weight, bias]
        mu_b = params[:, 0:1]          # (TC, 1) -> broadcasts against (BT, TC, 1)
        var_b = params[:, 1:2]
        w = params[:, 2:3]
        b = params[:, 3:4]

        # Per-instance, per-channel mean / unbiased variance over the TRUE L.
        # Padded lanes are zero -> they do not affect the sum; the variance masks them.
        mu = jnp.sum(x, axis=-1, keepdims=True) * inv_l                    # (BT, TC, 1)
        diff = x - mu
        if masked:
            lane = jax.lax.broadcasted_iota(jnp.int32, x.shape, 2)
            d = jnp.where(lane < l_actual, diff, 0.0)
        else:
            d = diff
        sigma2 = jnp.sum(d * d, axis=-1, keepdims=True) * inv_lm1          # (BT, TC, 1)

        s_mu = jnp.sqrt((var_b + eps) * inv_l)
        s_sigma2 = (var_b + eps) * s_sigma2_scale

        mu_adj = mu_b + softshrink(mu - mu_b, k * s_mu)
        sigma2_adj = jnp.maximum(var_b + softshrink(sigma2 - var_b, k * s_sigma2), 0.0)
        inv_std = jax.lax.rsqrt(sigma2_adj + eps)

        # Fold all per-channel terms into one (BT, TC, 1) scale/shift pair:
        #   (x - mu_adj) * inv_std * w + b == diff * scale + shift
        scale = inv_std * w
        shift = b - (mu_adj - mu) * scale
        o_ref[...] = (diff * scale + shift).astype(o_ref.dtype)
        # TODO(synk): optional v7x variants (MXU lane-reduction via ones-matmul, one-pass
        # sum/sumsq stats) left out pending measurement; kernel is HBM-bound on v5e/v6e f32.

    return kernel


# --------------------------------------------------------------------------------------
# Tiling / VMEM heuristics
# --------------------------------------------------------------------------------------
def _vmem_limit_bytes() -> int:
    """Scoped VMEM limit, safe on v5e/v6e/v7x.

    get_tpu_info() may report chip-level capacity on multi-TensorCore chips
    (v7x: 128 MiB/chip but 64 MiB per TC); halving plus the 48 MiB cap keeps us inside a
    single TensorCore's VMEM on every generation while still allowing ~6 MiB blocks.
    """
    try:
        cap = int(pltpu.get_tpu_info().vmem_capacity_bytes)
    except Exception:  # interpret mode / older runtimes
        cap = 64 << 20
    return int(min(cap // 2, 48 << 20))


def _pick_tiles(B: int, C: int, Lp: int, elt_bytes: int, vmem_limit: int):
    """Pick (BT, TC).

    Channel tile is a dtype-aware sublane multiple dividing C (or full C); batch tile is
    a divisor of B; the block is sized so that double-buffered in/out blocks plus the
    in-kernel f32 temporaries fit inside ~3/4 of the scoped VMEM limit.  Guarantees >= 2
    grid programs when the problem allows it (v7x has 2 TensorCores).
    """
    # Per-element VMEM estimate: 2 double-buffered input + 2 output native copies,
    # plus the f32 upcast and the f32 `diff` temporary inside the kernel.
    bytes_per_elem = 4 * elt_bytes + 8
    budget_elems = max(1, (vmem_limit * 3 // 4) // bytes_per_elem)

    min_sub = max(8, 32 // elt_bytes)  # f32 -> 8, bf16 -> 16, int8/fp8 -> 32
    tc_candidates = [d for d in range(min_sub, C + 1, min_sub) if C % d == 0]
    if not tc_candidates:
        tc_candidates = [C]            # full channel extent is always legal

    per_inst = lambda tc: tc * Lp
    if per_inst(tc_candidates[0]) > budget_elems:
        # TODO(synk): stream very long L via a third 'arbitrary' grid axis with partial
        # sum / sum-of-squares accumulators and a second normalization pass.
        raise ValueError(
            "InstanceAwareBatchNorm1d: a single "
            f"({tc_candidates[0]}, {Lp}) channel slab ({per_inst(tc_candidates[0])} elems) "
            f"exceeds the VMEM block budget ({budget_elems} elems); L-tiling not implemented.")

    tc = max(c for c in tc_candidates if per_inst(c) <= budget_elems)
    bt = max(d for d in range(1, B + 1) if B % d == 0 and d * per_inst(tc) <= budget_elems)

    # Ensure the parallel grid has >= 2 programs so both v7x TensorCores get work.
    if (B // bt) * (C // tc) < 2:
        if B >= 2:
            bt = max(d for d in range(1, B) if B % d == 0)
        else:
            smaller = [c for c in tc_candidates if c < C]
            if smaller:
                tc = max(smaller)
    return bt, tc


# --------------------------------------------------------------------------------------
# Wrapper
# --------------------------------------------------------------------------------------
def instance_aware_batch_norm_1d(x, running_mean, running_var, weight=None, bias=None,
                                 *, k=3.0, eps=1e-5, affine=True):
    """Eval-mode forward of InstanceAwareBatchNorm1d.

    x:            (B, C, L), any float dtype (kept native end-to-end)
    running_mean: (C,)
    running_var:  (C,)
    weight, bias: (C,) (required iff affine=True)
    """
    B, C, L = x.shape
    elt_bytes = jnp.dtype(x.dtype).itemsize

    # Lane-dense last dim: pad L up to a multiple of 128 so the output block's last dim
    # is an unmasked multiple of 128 lanes; statistics are masked back to the true L.
    Lp = ((L + LANE - 1) // LANE) * LANE
    masked = Lp != L
    x_in = jnp.pad(x, ((0, 0), (0, 0), (0, Lp - L))) if masked else x

    # Pack per-channel params into a single (C, 4) f32 array: [mu_b, var_b, w, b].
    mu_b = jnp.asarray(running_mean, jnp.float32).reshape(C)
    var_b = jnp.asarray(running_var, jnp.float32).reshape(C)
    if affine:
        w = jnp.asarray(weight, jnp.float32).reshape(C)
        b = jnp.asarray(bias, jnp.float32).reshape(C)
    else:
        w = jnp.ones((C,), jnp.float32)
        b = jnp.zeros((C,), jnp.float32)
    params = jnp.stack([mu_b, var_b, w, b], axis=1)  # (C, 4)

    vmem_limit = _vmem_limit_bytes()
    BT, TC = _pick_tiles(B, C, Lp, elt_bytes, vmem_limit)
    n_b, n_c = B // BT, C // TC

    kernel = _make_iabn1d_kernel(k, eps, L, masked)

    # Batch tile innermost: the (TC, 4) param block index stays constant across it, so
    # Pallas elides the redundant param DMAs.
    x_spec = pl.BlockSpec((BT, TC, Lp), lambda ci, bi: (bi, ci, 0))
    p_spec = pl.BlockSpec((TC, 4), lambda ci, bi: (ci, 0))

    cost = pl.CostEstimate(
        flops=10 * B * C * Lp,
        transcendentals=2 * B * C,
        bytes_accessed=2 * B * C * Lp * elt_bytes + 4 * 4 * C,
    )

    out = pl.pallas_call(
        kernel,
        out_shape=jax.ShapeDtypeStruct((B, C, Lp), x.dtype),
        grid_spec=pltpu.PrefetchScalarGridSpec(
            num_scalar_prefetch=0,
            grid=(n_c, n_b),
            in_specs=[x_spec, p_spec],
            out_specs=x_spec,
        ),
        compiler_params=pltpu.CompilerParams(
            dimension_semantics=("parallel", "parallel"),
            vmem_limit_bytes=vmem_limit,
        ),
        cost_estimate=cost,
    )(x_in, params)

    return out[:, :, :L] if masked else out


# --------------------------------------------------------------------------------------
# Pure-JAX reference (mirrors the PyTorch eval-mode forward)
# --------------------------------------------------------------------------------------
def _reference(x, running_mean, running_var, weight, bias, *, k=3.0, eps=1e-5):
    B, C, L = x.shape
    xf = x.astype(jnp.float32)
    mu = jnp.mean(xf, axis=2, keepdims=True)
    sigma2 = jnp.sum((xf - mu) ** 2, axis=2, keepdims=True) / (L - 1)
    mu_b = running_mean.reshape(1, C, 1)
    sigma2_b = running_var.reshape(1, C, 1)
    s_mu = jnp.sqrt((sigma2_b + eps) / L)
    s_sigma2 = (sigma2_b + eps) * np.sqrt(2.0 / (L - 1))

    def softshrink(v, lbd):
        return jnp.maximum(v - lbd, 0.0) - jnp.maximum(-(v + lbd), 0.0)

    mu_adj = mu_b + softshrink(mu - mu_b, k * s_mu)
    sigma2_adj = jnp.maximum(sigma2_b + softshrink(sigma2 - sigma2_b, k * s_sigma2), 0.0)
    x_n = (xf - mu_adj) * jax.lax.rsqrt(sigma2_adj + eps)
    return (x_n * weight.reshape(1, C, 1) + bias.reshape(1, C, 1)).astype(x.dtype)


if __name__ == "__main__":
    B, C, L = 2, 8, 128
    key = jax.random.PRNGKey(0)
    kx, km, kv, kw, kb = jax.random.split(key, 5)

    x = jax.random.normal(kx, (B, C, L), dtype=jnp.float32) * 2.0 + 0.5

    # Deterministically initialized "pretrained" BN parameters / running stats.
    running_mean = jax.random.normal(km, (C,), dtype=jnp.float32) * 0.1
    running_var = jax.random.uniform(kv, (C,), dtype=jnp.float32, minval=0.5, maxval=1.5)
    weight = 1.0 + 0.1 * jax.random.normal(kw, (C,), dtype=jnp.float32)
    bias = 0.1 * jax.random.normal(kb, (C,), dtype=jnp.float32)

    # f32, lane-aligned L.
    out = jax.block_until_ready(
        instance_aware_batch_norm_1d(x, running_mean, running_var, weight, bias,
                                     k=3.0, eps=1e-5, affine=True))
    ref = _reference(x, running_mean, running_var, weight, bias, k=3.0, eps=1e-5)
    np.testing.assert_allclose(np.asarray(out), np.asarray(ref), rtol=1e-5, atol=1e-5)

    # bf16 native-dtype path (dtype-aware tiling; output stays bf16); looser tolerance.
    x_bf16 = x.astype(jnp.bfloat16)
    out_bf16 = jax.block_until_ready(
        instance_aware_batch_norm_1d(x_bf16, running_mean, running_var, weight, bias,
                                     k=3.0, eps=1e-5, affine=True))
    ref_bf16 = _reference(x_bf16, running_mean, running_var, weight, bias, k=3.0, eps=1e-5)
    np.testing.assert_allclose(np.asarray(jnp.asarray(out_bf16, jnp.float32)),
                               np.asarray(jnp.asarray(ref_bf16, jnp.float32)),
                               rtol=2e-2, atol=2e-2)

    # Unaligned L (exercises the lane-padding + masked-variance path).
    x_un = x[:, :, :96]
    out_un = jax.block_until_ready(
        instance_aware_batch_norm_1d(x_un, running_mean, running_var, weight, bias,
                                     k=3.0, eps=1e-5, affine=True))
    ref_un = _reference(x_un, running_mean, running_var, weight, bias, k=3.0, eps=1e-5)
    np.testing.assert_allclose(np.asarray(out_un), np.asarray(ref_un), rtol=1e-5, atol=1e-5)

    # TODO(synk): training-mode branch (batch-statistics path + running-stat momentum
    # update of the inner nn.BatchNorm1d) is stateful and left out; this implements
    # the eval-mode forward with running statistics.
    print("KERNEL_OK")
</pallas_src>

<mosaic_0001>
module attributes {stable_mosaic.version = 11 : i64} {
  func.func @kernel(%arg0: i32, %arg1: i32, %arg2: memref<1x8x128xf32, #tpu.memory_space<vmem>>, %arg3: memref<8x4xf32, #tpu.memory_space<vmem>>, %arg4: memref<1x8x128xf32, #tpu.memory_space<vmem>>) attributes {dimension_semantics = [#tpu.dimension_semantics<parallel>, #tpu.dimension_semantics<parallel>], iteration_bounds = array<i64: 1, 2>, scalar_prefetch = 0 : i64, scratch_operands = 0 : i64, tpu.core_type = #tpu.core_type<tc>, window_params = [{transform_indices = @transform_0, window_bounds = array<i64: 1, 8, 128>}, {transform_indices = @transform_1, window_bounds = array<i64: 8, 4>}, {transform_indices = @transform_2, window_bounds = array<i64: 1, 8, 128>}]} {
    %c0 = arith.constant 0 : index
    %c0_0 = arith.constant 0 : index
    %c0_1 = arith.constant 0 : index
    %0 = vector.load %arg2[%c0, %c0_0, %c0_1] : memref<1x8x128xf32, #tpu.memory_space<vmem>>, vector<1x8x128xf32>
    %c0_2 = arith.constant 0 : index
    %c0_3 = arith.constant 0 : index
    %1 = vector.load %arg3[%c0_2, %c0_3] : memref<8x4xf32, #tpu.memory_space<vmem>>, vector<8x4xf32>
    %2 = vector.extract_strided_slice %1 {offsets = [0, 0], sizes = [8, 1], strides = [1, 1]} : vector<8x4xf32> to vector<8x1xf32>
    %3 = vector.extract_strided_slice %1 {offsets = [0, 1], sizes = [8, 1], strides = [1, 1]} : vector<8x4xf32> to vector<8x1xf32>
    %4 = vector.extract_strided_slice %1 {offsets = [0, 2], sizes = [8, 1], strides = [1, 1]} : vector<8x4xf32> to vector<8x1xf32>
    %5 = vector.extract_strided_slice %1 {offsets = [0, 3], sizes = [8, 1], strides = [1, 1]} : vector<8x4xf32> to vector<8x1xf32>
    %cst = arith.constant dense<0.000000e+00> : vector<1x8xf32>
    %6 = vector.multi_reduction <add>, %0, %cst [2] : vector<1x8x128xf32> to vector<1x8xf32>
    %7 = vector.shape_cast %6 : vector<1x8xf32> to vector<1x8x1xf32>
    %cst_4 = arith.constant 7.812500e-03 : f32
    %8 = vector.broadcast %cst_4 : f32 to vector<1x8x1xf32>
    %9 = arith.mulf %7, %8 : vector<1x8x1xf32>
    %10 = vector.broadcast %9 : vector<1x8x1xf32> to vector<1x8x128xf32>
    %11 = arith.subf %0, %10 : vector<1x8x128xf32>
    %12 = arith.mulf %11, %11 : vector<1x8x128xf32>
    %cst_5 = arith.constant dense<0.000000e+00> : vector<1x8xf32>
    %13 = vector.multi_reduction <add>, %12, %cst_5 [2] : vector<1x8x128xf32> to vector<1x8xf32>
    %14 = vector.shape_cast %13 : vector<1x8xf32> to vector<1x8x1xf32>
    %cst_6 = arith.constant 0.00787401571 : f32
    %15 = vector.broadcast %cst_6 : f32 to vector<1x8x1xf32>
    %16 = arith.mulf %14, %15 : vector<1x8x1xf32>
    %cst_7 = arith.constant 9.99999974E-6 : f32
    %17 = vector.broadcast %cst_7 : f32 to vector<8x1xf32>
    %18 = arith.addf %3, %17 : vector<8x1xf32>
    %cst_8 = arith.constant 7.812500e-03 : f32
    %19 = vector.broadcast %cst_8 : f32 to vector<8x1xf32>
    %20 = arith.mulf %18, %19 : vector<8x1xf32>
    %21 = math.sqrt %20 : vector<8x1xf32>
    %cst_9 = arith.constant 9.99999974E-6 : f32
    %22 = vector.broadcast %cst_9 : f32 to vector<8x1xf32>
    %23 = arith.addf %3, %22 : vector<8x1xf32>
    %cst_10 = arith.constant 0.125491157 : f32
    %24 = vector.broadcast %cst_10 : f32 to vector<8x1xf32>
    %25 = arith.mulf %23, %24 : vector<8x1xf32>
    %26 = vector.shape_cast %2 : vector<8x1xf32> to vector<1x8x1xf32>
    %27 = arith.subf %9, %26 : vector<1x8x1xf32>
    %cst_11 = arith.constant 3.000000e+00 : f32
    %28 = vector.broadcast %cst_11 : f32 to vector<8x1xf32>
    %29 = arith.mulf %28, %21 : vector<8x1xf32>
    %30 = vector.shape_cast %29 : vector<8x1xf32> to vector<1x8x1xf32>
    %31 = arith.subf %27, %30 : vector<1x8x1xf32>
    %cst_12 = arith.constant 0.000000e+00 : f32
    %32 = vector.broadcast %cst_12 : f32 to vector<1x8x1xf32>
    %33 = arith.maximumf %31, %32 : vector<1x8x1xf32>
    %34 = vector.shape_cast %29 : vector<8x1xf32> to vector<1x8x1xf32>
    %35 = arith.addf %27, %34 : vector<1x8x1xf32>
    %cst_13 = arith.constant 0.000000e+00 : f32
    %36 = vector.broadcast %cst_13 : f32 to vector<1x8x1xf32>
    %37 = arith.subf %36, %35 : vector<1x8x1xf32>
    %cst_14 = arith.constant 0.000000e+00 : f32
    %38 = vector.broadcast %cst_14 : f32 to vector<1x8x1xf32>
    %39 = arith.maximumf %37, %38 : vector<1x8x1xf32>
    %40 = arith.subf %33, %39 : vector<1x8x1xf32>
    %41 = vector.shape_cast %2 : vector<8x1xf32> to vector<1x8x1xf32>
    %42 = arith.addf %41, %40 : vector<1x8x1xf32>
    %43 = vector.shape_cast %3 : vector<8x1xf32> to vector<1x8x1xf32>
    %44 = arith.subf %16, %43 : vector<1x8x1xf32>
    %cst_15 = arith.constant 3.000000e+00 : f32
    %45 = vector.broadcast %cst_15 : f32 to vector<8x1xf32>
    %46 = arith.mulf %45, %25 : vector<8x1xf32>
    %47 = vector.shape_cast %46 : vector<8x1xf32> to vector<1x8x1xf32>
    %48 = arith.subf %44, %47 : vector<1x8x1xf32>
    %cst_16 = arith.constant 0.000000e+00 : f32
    %49 = vector.broadcast %cst_16 : f32 to vector<1x8x1xf32>
    %50 = arith.maximumf %48, %49 : vector<1x8x1xf32>
    %51 = vector.shape_cast %46 : vector<8x1xf32> to vector<1x8x1xf32>
    %52 = arith.addf %44, %51 : vector<1x8x1xf32>
    %cst_17 = arith.constant 0.000000e+00 : f32
    %53 = vector.broadcast %cst_17 : f32 to vector<1x8x1xf32>
    %54 = arith.subf %53, %52 : vector<1x8x1xf32>
    %cst_18 = arith.constant 0.000000e+00 : f32
    %55 = vector.broadcast %cst_18 : f32 to vector<1x8x1xf32>
    %56 = arith.maximumf %54, %55 : vector<1x8x1xf32>
    %57 = arith.subf %50, %56 : vector<1x8x1xf32>
    %58 = vector.shape_cast %3 : vector<8x1xf32> to vector<1x8x1xf32>
    %59 = arith.addf %58, %57 : vector<1x8x1xf32>
    %cst_19 = arith.constant 0.000000e+00 : f32
    %60 = vector.broadcast %cst_19 : f32 to vector<1x8x1xf32>
    %61 = arith.maximumf %59, %60 : vector<1x8x1xf32>
    %cst_20 = arith.constant 9.99999974E-6 : f32
    %62 = vector.broadcast %cst_20 : f32 to vector<1x8x1xf32>
    %63 = arith.addf %61, %62 : vector<1x8x1xf32>
    %64 = math.rsqrt %63 : vector<1x8x1xf32>
    %65 = vector.shape_cast %4 : vector<8x1xf32> to vector<1x8x1xf32>
    %66 = arith.mulf %64, %65 : vector<1x8x1xf32>
    %67 = arith.subf %42, %9 : vector<1x8x1xf32>
    %68 = arith.mulf %67, %66 : vector<1x8x1xf32>
    %69 = vector.shape_cast %5 : vector<8x1xf32> to vector<1x8x1xf32>
    %70 = arith.subf %69, %68 : vector<1x8x1xf32>
    %71 = vector.broadcast %66 : vector<1x8x1xf32> to vector<1x8x128xf32>
    %72 = arith.mulf %11, %71 : vector<1x8x128xf32>
    %73 = vector.broadcast %70 : vector<1x8x1xf32> to vector<1x8x128xf32>
    %74 = arith.addf %72, %73 : vector<1x8x128xf32>
    %c0_21 = arith.constant 0 : index
    %c0_22 = arith.constant 0 : index
    %c0_23 = arith.constant 0 : index
    %75 = vector.load %arg4[%c0_21, %c0_22, %c0_23] : memref<1x8x128xf32, #tpu.memory_space<vmem>>, vector<1x8x128xf32>
    tpu.vector_store %arg4[%c0_21, %c0_22, %c0_23], %74 {strides = array<i32>} : memref<1x8x128xf32, #tpu.memory_space<vmem>>, vector<1x8x128xf32>,
    return
  }
  func.func @transform_0(%arg0: i32, %arg1: i32) -> (i32, i32, i32) {
    %c0_i32 = arith.constant 0 : i32
    %c0_i32_0 = arith.constant 0 : i32
    return %arg1, %arg0, %c0_i32 : i32, i32, i32
  }
  func.func @transform_1(%arg0: i32, %arg1: i32) -> (i32, i32) {
    %c0_i32 = arith.constant 0 : i32
    %c0_i32_0 = arith.constant 0 : i32
    return %arg0, %c0_i32 : i32, i32
  }
  func.func @transform_2(%arg0: i32, %arg1: i32) -> (i32, i32, i32) {
    %c0_i32 = arith.constant 0 : i32
    %c0_i32_0 = arith.constant 0 : i32
    return %arg1, %arg0, %c0_i32 : i32, i32, i32
  }
}

</mosaic_0001>

<llo_original>
// kernel: tpu_custom_call.1
$region0: #{tpu_custom_call.1}
  #allocation0 [shape = 'u32[]', space=smem, size = 0x4, offset = 0x4, fixed_abs, tag = 'smem constant byte address 0x4 - core index']
  #allocation1 [shape = 'u32[144,128]{1,0:T(1,128)}', space=vmem, size = 0x12000, scoped, tag = 'internal scratch']
  %s0 = inlined_call_operand.hbm [shape: f32[2,8,128], index: 0, kind: input, shape index: {}]
  %s1 = inlined_call_operand.vmem [shape: f32[8,4], index: 1, kind: input, shape index: {}]
  %s2 = inlined_call_operand.hbm [shape: f32[2,8,128], index: 2, kind: output, shape index: {}]
  %s3 = sld [smem:[#allocation0]]
  $region45: #{tpu_custom_call.1} parent=0
    _
  %s5 = ssub.s32 1, %s3
  %s6 = scalar_select 0, %s5, %s3
  $region1: #{tpu_custom_call.1} parent=0
    #allocation2 [shape = 'u8[8192]{0}', space=vmem, size = 0x2000, scoped, tag = 'input window, operand 0']
    #allocation3 [shape = 's32[2]{0}', space=sflag, size = 0x8, scoped, tag = 'scoped memory for tpu_custom_call.1']
    #allocation4 [shape = 's32[2]{0}', space=sflag, size = 0x8, scoped, tag = 'scoped memory for tpu_custom_call.1']
    #allocation5 [shape = 'u8[8192]{0}', space=vmem, size = 0x2000, scoped, tag = 'output window, operand 0']
    %7 = vsyncpa [#allocation3], 0
    %s8 = scalar_lea.sflag [#allocation3], 1
    %9 = vsyncpa %s8, 0
    %10 = vsyncpa [#allocation4], 0
    %s11 = scalar_lea.sflag [#allocation4], 1
    %12 = vsyncpa %s11, 0
    loop: start=0, step=1, limit=4
    $region2: #{tpu_custom_call.1} parent=1 // loop_pre_header
      _
    $region3: #{tpu_custom_call.1} parent=1 // loop_header
      %s14 = sphi 0, %s18
      %p15 = scmp.ge.s32.totalorder %s14, 4
      %s21 = sphi 0, %s33
      %s22 = sphi 0, %s29
      %s23 = sphi 0, %s21
      %s24 = sphi 0, %s22
      %s25 = sphi 0, %s23
      %s26 = sphi 0, %s24
      %s38 = sphi 0, %s40
      %s41 = sphi 0, %s38
      %s42 = sphi 0, %s41
      %s58 = sphi 0, %s42
      %s64 = sphi 0, %s66
      %s67 = sphi 0, %s64
      %s68 = sphi 0, %s67
      %s84 = sphi 0, %s68
      %s92 = sphi 0, %s94
      %s95 = sphi 0, %s92
      %s96 = sphi 0, %s95
      %s112 = sphi 0, %s96
    $region4: #{tpu_custom_call.1} parent=1 // loop_header_branch
      %17 = sbr.rel (%p15) target = $region8
    $region5: #{tpu_custom_call.1} parent=1 // loop_body
      %s19 = ssub.s32 %s14, 1
      %s20 = ssub.s32 %s14, 2
      %s27 = sadd.s32 1, %s22
      %p28 = scmp.ge.s32.totalorder %s27, 2
      %s29 = scalar_select %p28, 0, %s27
      %s30 = sadd.s32 1, %s21
      %s31 = scalar_select %p28, %s30, %s21
      %p32 = scmp.ge.s32.totalorder %s31, 1
      %s33 = scalar_select %p32, 0, %s31
      %s34 = ssub.s32 %s22, %s29
      %s35 = ssub.s32 %s21, %s33
      %s36 = sor.u32 %s34, %s35
      %p37 = scmp.eq.s32.totalorder %s36, 0
      %s39 = sadd.s32 %s38, 1
      %s40 = scalar_select %p37, %s38, %s39
      %p43 = pneg %p37
      %p44 = scmp.eq.s32.totalorder %s14, 1
      %p45 = por %p43, %p44
      %p46 = scmp.ne.s32.totalorder %s38, %s41
      %p47 = scmp.eq.s32.totalorder %s14, 0
      %p48 = por %p46, %p47
      %p49 = scmp.ne.s32.totalorder %s38, %s41
      %p50 = scmp.eq.s32.totalorder %s19, 1
      %p51 = por %p49, %p50
      %p52 = scmp.ne.s32.totalorder %s41, %s42
      %p53 = scmp.eq.s32.totalorder %s19, 0
      %p54 = por %p52, %p53
      %p55 = scmp.ne.s32.totalorder %s41, %s42
      %p56 = scmp.eq.s32.totalorder %s20, 1
      %p57 = por %p55, %p56
      %p59 = scmp.ne.s32.totalorder %s42, %s58
      %p60 = scmp.eq.s32.totalorder %s20, 0
      %p61 = por %p59, %p60
      %s62 = ssub.s32 %s21, %s33
      %p63 = scmp.eq.s32.totalorder %s62, 0
      %s65 = sadd.s32 %s64, 1
      %s66 = scalar_select %p63, %s64, %s65
      %p69 = pneg %p63
      %p70 = scmp.eq.s32.totalorder %s14, 1
      %p71 = por %p69, %p70
      %p72 = scmp.ne.s32.totalorder %s64, %s67
      %p73 = scmp.eq.s32.totalorder %s14, 0
      %p74 = por %p72, %p73
      %p75 = scmp.ne.s32.totalorder %s64, %s67
      %p76 = scmp.eq.s32.totalorder %s19, 1
      %p77 = por %p75, %p76
      %p78 = scmp.ne.s32.totalorder %s67, %s68
      %p79 = scmp.eq.s32.totalorder %s19, 0
      %p80 = por %p78, %p79
      %p81 = scmp.ne.s32.totalorder %s67, %s68
      %p82 = scmp.eq.s32.totalorder %s20, 1
      %p83 = por %p81, %p82
      %p85 = scmp.ne.s32.totalorder %s68, %s84
      %p86 = scmp.eq.s32.totalorder %s20, 0
      %p87 = por %p85, %p86
      %s88 = ssub.s32 %s22, %s29
      %s89 = ssub.s32 %s21, %s33
      %s90 = sor.u32 %s88, %s89
      %p91 = scmp.eq.s32.totalorder %s90, 0
      %s93 = sadd.s32 %s92, 1
      %s94 = scalar_select %p91, %s92, %s93
      %p97 = pneg %p91
      %p98 = scmp.eq.s32.totalorder %s14, 1
      %p99 = por %p97, %p98
      %p100 = scmp.ne.s32.totalorder %s92, %s95
      %p101 = scmp.eq.s32.totalorder %s14, 0
      %p102 = por %p100, %p101
      %p103 = scmp.ne.s32.totalorder %s92, %s95
      %p104 = scmp.eq.s32.totalorder %s19, 1
      %p105 = por %p103, %p104
      %p106 = scmp.ne.s32.totalorder %s95, %s96
      %p107 = scmp.eq.s32.totalorder %s19, 0
      %p108 = por %p106, %p107
      %p109 = scmp.ne.s32.totalorder %s95, %s96
      %p110 = scmp.eq.s32.totalorder %s20, 1
      %p111 = por %p109, %p110
      %p113 = scmp.ne.s32.totalorder %s96, %s112
      %p114 = scmp.eq.s32.totalorder %s20, 0
      %p115 = por %p113, %p114
      %p116 = scmp.le.s32.totalorder 1, %s14
      %p117 = scmp.lt.s32.totalorder %s14, 3
      %p118 = pnand %p116, %p117
      %p119 = pneg %p118
      // Predicated region
      $region9: #{tpu_custom_call.1} parent=5 // pred_check
        _
      $region10: #{tpu_custom_call.1} parent=5 // pred_check_branch
        %121 = sbr.rel (%p118) target = $region12
      $region11: #{tpu_custom_call.1} parent=5 // pred_region
        %s122 = ssub.s32 %s14, 1
        // Predicated region
        $region13: #{tpu_custom_call.1} parent=11 // pred_check
          %p123 = pneg %p80
        $region14: #{tpu_custom_call.1} parent=11 // pred_check_branch
          %125 = sbr.rel (%p123) target = $region16
        $region15: #{tpu_custom_call.1} parent=11 // pred_region
          %p126 = scmp.lt.s32.totalorder %s23, 0
          %s127 = scalar_select %p126, %s23, 0
          %s128 = smul.addr %s127, 8
          %s129 = scalar_lea.vmem %s1, %s128
        $region16: #{tpu_custom_call.1} parent=11 // pred_fallthru
          _
      $region12: #{tpu_custom_call.1} parent=5 // pred_fallthru
        _
      %p130 = scmp.lt.s32.totalorder %s14, 2
      // Predicated region
      $region17: #{tpu_custom_call.1} parent=5 // pred_check
        %p131 = pneg %p130
      $region18: #{tpu_custom_call.1} parent=5 // pred_check_branch
        %133 = sbr.rel (%p131) target = $region20
      $region19: #{tpu_custom_call.1} parent=5 // pred_region
        // Predicated region
        $region21: #{tpu_custom_call.1} parent=19 // pred_check
          %p134 = pneg %p48
        $region22: #{tpu_custom_call.1} parent=19 // pred_check_branch
          %136 = sbr.rel (%p134) target = $region24
        $region23: #{tpu_custom_call.1} parent=19 // pred_region
          %s137 = sand.u32 %s38, 1
          %s138 = scalar_lea.sflag [#allocation3], %s137
          %s139 = sand.u32 %s38, 1
          %s140 = smul.addr %s139, 8
          %s141 = scalar_lea.vmem [#allocation2], %s140
          %s143 = ssub.s32 128, 128
          %144 = vsyncadd %s138, %s143
          %s145 = sadd.s32 %s21, %s22
          %s146 = smul.addr %s145, 128
          %s147 = scalar_lea.hbm %s0, %s146
          %s149 = sshll.u32 %s141, 4
          %s150 = int_to_ptr.vmem [resolvable:$true] %s149
          %152 = dma.hbm_to_vmem [thread:$0]  %s147, 128, %s150, %s138
        $region24: #{tpu_custom_call.1} parent=19 // pred_fallthru
          _
      $region20: #{tpu_custom_call.1} parent=5 // pred_fallthru
        _
      %p153 = scmp.le.s32.totalorder 1, %s14
      %p154 = scmp.lt.s32.totalorder %s14, 3
      %p155 = pnand %p153, %p154
      %p156 = pneg %p155
      // Predicated region
      $region25: #{tpu_custom_call.1} parent=5 // pred_check
        _
      $region26: #{tpu_custom_call.1} parent=5 // pred_check_branch
        %158 = sbr.rel (%p155) target = $region28
      $region27: #{tpu_custom_call.1} parent=5 // pred_region
        %s159 = ssub.s32 %s14, 1
        %s160 = sand.u32 %s41, 1
        %s161 = scalar_lea.sflag [#allocation3], %s160
        %s162 = sand.u32 %s41, 1
        %s163 = smul.addr %s162, 8
        %s164 = scalar_lea.vmem [#allocation2], %s163
        // Predicated region
        $region29: #{tpu_custom_call.1} parent=27 // pred_check
          %p165 = pneg %p54
        $region30: #{tpu_custom_call.1} parent=27 // pred_check_branch
          %167 = sbr.rel (%p165) target = $region32
        $region31: #{tpu_custom_call.1} parent=27 // pred_region
          %168 = dma.done %s161, 128
        $region32: #{tpu_custom_call.1} parent=27 // pred_fallthru
          _
        %s169 = sand.u32 %s41, 1
        %s170 = scalar_lea.sflag [#allocation3], %s169
        %s171 = sand.u32 %s41, 1
        %s172 = smul.addr %s171, 8
        %s173 = scalar_lea.vmem [#allocation2], %s172
        %p174 = pneg %p54
        %p175 = pneg %p51
        %p176 = scmp.lt.s32.totalorder %s23, 0
        %s177 = scalar_select %p176, %s23, 0
        %s178 = smul.addr %s177, 8
        %s179 = scalar_lea.vmem %s1, %s178
        %p180 = pneg %p80
        %p181 = pneg %p77
        %p182 = pneg %p108
        %p183 = pneg %p105
        %s184 = sand.u32 %s95, 1
        %s185 = scalar_lea.sflag [#allocation4], %s184
        %s186 = sand.u32 %s95, 1
        %s187 = smul.addr %s186, 8
        %s188 = scalar_lea.vmem [#allocation5], %s187
        %p189 = scmp.lt.s32.totalorder %s23, 0
        %s190 = scalar_select %p189, %s23, 0
        %s191 = smul.addr %s190, 8
        %s192 = scalar_lea.vmem %s1, %s191
        %v193 = vld [vmem:[%s164] sm:$0xff]
        %v194 = vld [vmem:[%s192] sm:$0xff]
        %195 = vadd.xlane.f32.xlu0 %v193
        %v196 = vpop.xlane.xlu0 %195
        %v197 = vmul.f32 %v196, 0.0078125
        %v198 = vsub.f32 %v193, %v197
        %v199 = vmul.f32 %v198, %v198
        %200 = vadd.xlane.f32.xlu0 %v199
        %v201 = vpop.xlane.xlu0 %200
        %v202 = vmul.f32 %v201, 0.007874016
        %v203 = vadd.f32 %v194, 1e-05
        %v204 = vmul.f32 %v203, 0.0078125
        %v205 = vrsqrt.pop %v204
        %v206 = vmul.f32 %v204, %v205
        %vm207 = vcmp.eq.f32.partialorder %v204, inf
        %v208 = vsel %vm207, %v204, %v206
        %vm209 = vcmp.eq.f32.partialorder %v204, 0.0
        %v210 = vand.u32 %v204, 2147483648
        %v211 = vsel %vm209, %v210, %v208
        %v212 = vmul.f32 %v203, 0.12549116
        %v213 = vsub.f32 %v197, %v194
        %v214 = vmul.f32 %v211, 3.0
        %216 = vrot.lane.b32.xlu0 %v214, 127
        %v217 = vpop.permute.xlu0 %216
        %v219 = vsub.f32 %v213, %v217
        %v220 = vmax.f32 %v219, 0.0
        %v221 = vadd.f32 %v213, %v217
        %v222 = vsub.f32 0.0, %v221
        %v223 = vmax.f32 %v222, 0.0
        %v224 = vsub.f32 %v220, %v223
        %v225 = vadd.f32 %v194, %v224
        %v226 = vsub.f32 %v202, %v194
        %v227 = vmul.f32 %v212, 3.0
        %v228 = vsub.f32 %v226, %v227
        %v229 = vmax.f32 %v228, 0.0
        %v230 = vadd.f32 %v226, %v227
        %v231 = vsub.f32 0.0, %v230
        %v232 = vmax.f32 %v231, 0.0
        %v233 = vsub.f32 %v229, %v232
        %v234 = vadd.f32 %v194, %v233
        %v235 = vmax.f32 %v234, 0.0
        %v236 = vadd.f32 %v235, 1e-05
        %v237 = vrsqrt.pop %v236
        %239 = vrot.lane.b32.xlu0 %v194, 127
        %v240 = vpop.permute.xlu0 %239
        %v242 = vmul.f32 %v237, %v240
        %v243 = vsub.f32 %v225, %v197
        %245 = vrot.lane.b32.xlu0 %v242, 127
        %v246 = vpop.permute.xlu0 %245
        %v248 = vmul.f32 %v243, %v246
        %250 = vrot.lane.b32.xlu0 %v248, 3
        %v251 = vpop.permute.xlu0 %250
        %v253 = vsub.f32 %v194, %v251
        %254 = vset.pattern.permute.xlu0 1
        %255 = vperm.xlu0 %254, %v242
        %v256 = vpop.permute.xlu0 %255
        %v258 = vmul.f32 %v198, %v256
        %260 = vset.pattern.permute.xlu0 3
        %261 = vperm.xlu0 %260, %v253
        %v262 = vpop.permute.xlu0 %261
        %v264 = vadd.f32 %v258, %v262
        %265 = vst [vmem:[%s188] sm:$0xff] %v264
        %s266 = sand.u32 %s95, 1
        %s267 = scalar_lea.sflag [#allocation4], %s266
        %s268 = sand.u32 %s95, 1
        %s269 = smul.addr %s268, 8
        %s270 = scalar_lea.vmem [#allocation5], %s269
        // Predicated region
        $region33: #{tpu_custom_call.1} parent=27 // pred_check
          %p271 = pneg %p105
        $region34: #{tpu_custom_call.1} parent=27 // pred_check_branch
          %273 = sbr.rel (%p271) target = $region36
        $region35: #{tpu_custom_call.1} parent=27 // pred_region
          %s275 = ssub.s32 128, 128
          %276 = vsyncadd %s267, %s275
          %s277 = sadd.s32 %s23, %s24
          %s278 = smul.addr %s277, 128
          %s279 = scalar_lea.hbm %s2, %s278
          %s281 = sshll.u32 %s270, 4
          %s282 = int_to_ptr.vmem [resolvable:$true] %s281
          %284 = dma.vmem_to_hbm [thread:$0]  %s282, 128, %s279, %s267
        $region36: #{tpu_custom_call.1} parent=27 // pred_fallthru
          _
      $region28: #{tpu_custom_call.1} parent=5 // pred_fallthru
        _
      %p285 = scmp.le.s32.totalorder 2, %s14
      // Predicated region
      $region37: #{tpu_custom_call.1} parent=5 // pred_check
        %p286 = pneg %p285
      $region38: #{tpu_custom_call.1} parent=5 // pred_check_branch
        %288 = sbr.rel (%p286) target = $region40
      $region39: #{tpu_custom_call.1} parent=5 // pred_region
        %s289 = ssub.s32 %s14, 2
        // Predicated region
        $region41: #{tpu_custom_call.1} parent=39 // pred_check
          %p290 = pneg %p111
        $region42: #{tpu_custom_call.1} parent=39 // pred_check_branch
          %292 = sbr.rel (%p290) target = $region44
        $region43: #{tpu_custom_call.1} parent=39 // pred_region
          %s293 = sand.u32 %s96, 1
          %s294 = scalar_lea.sflag [#allocation4], %s293
          %s295 = sand.u32 %s96, 1
          %s296 = smul.addr %s295, 8
          %s297 = scalar_lea.vmem [#allocation5], %s296
          %298 = dma.done %s294, 128
        $region44: #{tpu_custom_call.1} parent=39 // pred_fallthru
          _
      $region40: #{tpu_custom_call.1} parent=5 // pred_fallthru
        _
    $region6: #{tpu_custom_call.1} parent=1 // loop_footer
      %s18 = sadd.s32 1, %s14
    $region7: #{tpu_custom_call.1} parent=1 // loop_footer_branch
      %13 = sbr.rel target = $region3
    $region8: #{tpu_custom_call.1} parent=1 // loop_exit
      _
    %299 = vsyncpa [#allocation3], 1
    %s300 = scalar_lea.sflag [#allocation3], 1
    %301 = vsyncpa %s300, 1
    %302 = vsyncpa [#allocation4], 1
    %s303 = scalar_lea.sflag [#allocation4], 1
    %304 = vsyncpa %s303, 1

</llo_original>
